<compile_context>
chip_gen: v6e
topology: v6e:2x2x1
jax: 0.10.0
libtpu: 0.0.40
codegen_flags: <defaults>
</compile_context>

<pallas_src>
import math

import jax
import jax.numpy as jnp
from jax.experimental import pallas as pl
from jax.experimental.pallas import tpu as pltpu  # noqa: F401  (TPU backend; no extra params needed at this size)


def _model_kernel(xt_ref, z_ref, wl_ref, ws_ref, b2_ref, o_ref):
    """Single invocation: the whole problem (<4 KiB) lives in VMEM.

    Closed form of the torch graph:
        out[b,i,j,k] = v1[b,j,i,k] + 5*v1[b,k,i,j] + v1[b,i,k,j],   v1 = linear(x)

    With F_in == 2 the linear is just two broadcast multiply-adds (VPU, no MXU):
        term_lane[b,i,j,k] = xt[b,i,j,0]*w[k,0] + xt[b,i,j,1]*w[k,1]   (= v1[b,j,i,k] - b[k])
        term_sub [b,i,j,k] = z[b,i,0,k]*w[j,0]  + z[b,i,1,k]*w[j,1]    (= v1[b,i,k,j] + 5*v1[b,k,i,j] - 6*b[j])
        out = term_lane + term_sub + (b[k] + 6*b[j])
    where xt[b,i,j,f] = x[b,j,i,f] and z[b,i,f,k] = x[b,i,k,f] + 5*x[b,k,i,f] are
    pre-arranged in the (jitted) wrapper, so the kernel needs no in-kernel transpose,
    relayout or matmul — only lane/sublane broadcasts, FMAs and one full-block store.
    """
    xt = xt_ref[...]   # (B, n, n, F)
    z = z_ref[...]     # (B, n, F, n)
    wl = wl_ref[...]   # (F, O) == w.T   (rows are lane vectors, index k)
    ws = ws_ref[...]   # (O, F) == w     (columns are sublane vectors, index j)
    b2 = b2_ref[...]   # (O, O): b2[j, k] = b[k] + 6*b[j]

    # (B,n,n,1)*(1,O) -> (B,n,n,O): contribution of v1[b,j,i,k] (bias folded into b2)
    term_lane = xt[..., 0:1] * wl[0:1, :] + xt[..., 1:2] * wl[1:2, :]
    # (B,n,1,n)*(O,1) -> (B,n,O,n): contribution of v1[b,i,k,j] + 5*v1[b,k,i,j]
    term_sub = z[:, :, 0:1, :] * ws[:, 0:1] + z[:, :, 1:2, :] * ws[:, 1:2]

    o_ref[...] = term_lane + term_sub + b2   # single full-block store


@jax.jit
def model_forward(x, w, b):
    """x: (B, C, H, F_in) with C == H == out_features; w: (O, F_in); b: (O,)."""
    B, C, H, F = x.shape
    O = w.shape[0]
    assert C == O and H == O, "permute/add chain requires C == H == out_features"
    assert F == w.shape[1]

    # Tiny layout plumbing in plain JAX (fused by jit into one small op): two
    # pre-arranged views of x (~0.6 KiB each), the transposed weight and a combined
    # 6x6 bias table. The Pallas kernel itself is one grid step, pure VPU work.
    xt = jnp.swapaxes(x, 1, 2)                                                   # (B, H, C, F)
    z = jnp.transpose(x, (0, 1, 3, 2)) + 5.0 * jnp.transpose(x, (0, 2, 3, 1))    # (B, C, F, H)
    wl = w.T                                                                     # (F, O)
    b2 = b[None, :] + 6.0 * b[:, None]                                           # (O, O)

    return pl.pallas_call(
        _model_kernel,
        out_shape=jax.ShapeDtypeStruct((B, C, H, O), jnp.float32),
        # No grid: single invocation, all operands are full blocks resident in VMEM.
    )(xt, z, wl, w, b2)


def reference(x, w, b):
    """Plain-JAX mirror of the torch forward (permute == jnp.transpose)."""
    v1 = jnp.einsum("bchf,of->bcho", x, w) + b
    v2 = jnp.transpose(v1, (0, 1, 3, 2))
    v3 = jnp.transpose(v2, (0, 2, 3, 1))
    v4 = v1 + v3
    v5 = v4 + v3
    v6 = v5 + v3
    _v7 = v6 + v3
    v8 = v6 + v3
    v9 = jnp.transpose(v1, (0, 3, 1, 2))
    v10 = v3 + v9
    v11 = v10 + v1
    v12 = v11 + v10
    v13 = v12 + v10
    _v14 = v13 + v10
    v15 = jnp.transpose(v10, (0, 1, 3, 2))
    v16 = v8 + v15
    v17 = jnp.transpose(v16, (0, 2, 1, 3))
    _v18 = v17 + jnp.transpose(v17, (0, 2, 3, 1))
    return v17


if __name__ == "__main__":
    key = jax.random.PRNGKey(0)
    kx, kw, kb = jax.random.split(key, 3)

    # Deterministic parameters for nn.Linear(2, 6): weight (6, 2), bias (6,)
    bound = 1.0 / math.sqrt(2.0)
    w = jax.random.uniform(kw, (6, 2), jnp.float32, minval=-bound, maxval=bound)
    b = jax.random.uniform(kb, (6,), jnp.float32, minval=-bound, maxval=bound)

    # Input (B, C, H, F_in) = (2, 6, 6, 2)
    x = jax.random.normal(kx, (2, 6, 6, 2), dtype=jnp.float32)

    out = jax.block_until_ready(model_forward(x, w, b))
    ref = reference(x, w, b)

    assert out.shape == ref.shape, (out.shape, ref.shape)
    if not bool(jnp.allclose(out, ref, atol=1e-4, rtol=1e-4)):
        raise AssertionError("Pallas kernel output does not match reference")
    print("KERNEL_OK")
</pallas_src>

<mosaic_0001>
module attributes {stable_mosaic.version = 11 : i64} {
  func.func @_model_kernel(%arg0: memref<2x6x6x2xf32, #tpu.memory_space<vmem>>, %arg1: memref<2x6x2x6xf32, #tpu.memory_space<vmem>>, %arg2: memref<2x6xf32, #tpu.memory_space<vmem>>, %arg3: memref<6x2xf32, #tpu.memory_space<vmem>>, %arg4: memref<6x6xf32, #tpu.memory_space<vmem>>, %arg5: memref<2x6x6x6xf32, #tpu.memory_space<vmem>>) attributes {dimension_semantics = [], scalar_prefetch = 0 : i64, scratch_operands = 0 : i64, tpu.core_type = #tpu.core_type<tc>} {
    %c0 = arith.constant 0 : index
    %c0_0 = arith.constant 0 : index
    %c0_1 = arith.constant 0 : index
    %c0_2 = arith.constant 0 : index
    %0 = vector.load %arg0[%c0, %c0_0, %c0_1, %c0_2] : memref<2x6x6x2xf32, #tpu.memory_space<vmem>>, vector<2x6x6x2xf32>
    %c0_3 = arith.constant 0 : index
    %c0_4 = arith.constant 0 : index
    %c0_5 = arith.constant 0 : index
    %c0_6 = arith.constant 0 : index
    %1 = vector.load %arg1[%c0_3, %c0_4, %c0_5, %c0_6] : memref<2x6x2x6xf32, #tpu.memory_space<vmem>>, vector<2x6x2x6xf32>
    %c0_7 = arith.constant 0 : index
    %c0_8 = arith.constant 0 : index
    %2 = vector.load %arg2[%c0_7, %c0_8] : memref<2x6xf32, #tpu.memory_space<vmem>>, vector<2x6xf32>
    %c0_9 = arith.constant 0 : index
    %c0_10 = arith.constant 0 : index
    %3 = vector.load %arg3[%c0_9, %c0_10] : memref<6x2xf32, #tpu.memory_space<vmem>>, vector<6x2xf32>
    %c0_11 = arith.constant 0 : index
    %c0_12 = arith.constant 0 : index
    %4 = vector.load %arg4[%c0_11, %c0_12] : memref<6x6xf32, #tpu.memory_space<vmem>>, vector<6x6xf32>
    %5 = vector.extract_strided_slice %0 {offsets = [0, 0, 0, 0], sizes = [2, 6, 6, 1], strides = [1, 1, 1, 1]} : vector<2x6x6x2xf32> to vector<2x6x6x1xf32>
    %6 = vector.extract_strided_slice %2 {offsets = [0, 0], sizes = [1, 6], strides = [1, 1]} : vector<2x6xf32> to vector<1x6xf32>
    %7 = vector.shape_cast %6 : vector<1x6xf32> to vector<1x1x1x6xf32>
    %8 = vector.broadcast %5 : vector<2x6x6x1xf32> to vector<2x6x6x6xf32>
    %9 = vector.broadcast %7 : vector<1x1x1x6xf32> to vector<2x6x6x6xf32>
    %10 = arith.mulf %8, %9 : vector<2x6x6x6xf32>
    %11 = vector.extract_strided_slice %0 {offsets = [0, 0, 0, 1], sizes = [2, 6, 6, 1], strides = [1, 1, 1, 1]} : vector<2x6x6x2xf32> to vector<2x6x6x1xf32>
    %12 = vector.extract_strided_slice %2 {offsets = [1, 0], sizes = [1, 6], strides = [1, 1]} : vector<2x6xf32> to vector<1x6xf32>
    %13 = vector.shape_cast %12 : vector<1x6xf32> to vector<1x1x1x6xf32>
    %14 = vector.broadcast %11 : vector<2x6x6x1xf32> to vector<2x6x6x6xf32>
    %15 = vector.broadcast %13 : vector<1x1x1x6xf32> to vector<2x6x6x6xf32>
    %16 = arith.mulf %14, %15 : vector<2x6x6x6xf32>
    %17 = arith.addf %10, %16 : vector<2x6x6x6xf32>
    %18 = vector.extract_strided_slice %1 {offsets = [0, 0, 0, 0], sizes = [2, 6, 1, 6], strides = [1, 1, 1, 1]} : vector<2x6x2x6xf32> to vector<2x6x1x6xf32>
    %19 = vector.extract_strided_slice %3 {offsets = [0, 0], sizes = [6, 1], strides = [1, 1]} : vector<6x2xf32> to vector<6x1xf32>
    %20 = vector.shape_cast %19 : vector<6x1xf32> to vector<1x1x6x1xf32>
    %21 = vector.broadcast %18 : vector<2x6x1x6xf32> to vector<2x6x6x6xf32>
    %22 = vector.broadcast %20 : vector<1x1x6x1xf32> to vector<2x6x6x6xf32>
    %23 = arith.mulf %21, %22 : vector<2x6x6x6xf32>
    %24 = vector.extract_strided_slice %1 {offsets = [0, 0, 1, 0], sizes = [2, 6, 1, 6], strides = [1, 1, 1, 1]} : vector<2x6x2x6xf32> to vector<2x6x1x6xf32>
    %25 = vector.extract_strided_slice %3 {offsets = [0, 1], sizes = [6, 1], strides = [1, 1]} : vector<6x2xf32> to vector<6x1xf32>
    %26 = vector.shape_cast %25 : vector<6x1xf32> to vector<1x1x6x1xf32>
    %27 = vector.broadcast %24 : vector<2x6x1x6xf32> to vector<2x6x6x6xf32>
    %28 = vector.broadcast %26 : vector<1x1x6x1xf32> to vector<2x6x6x6xf32>
    %29 = arith.mulf %27, %28 : vector<2x6x6x6xf32>
    %30 = arith.addf %23, %29 : vector<2x6x6x6xf32>
    %31 = arith.addf %17, %30 : vector<2x6x6x6xf32>
    %32 = vector.shape_cast %4 : vector<6x6xf32> to vector<1x1x6x6xf32>
    %33 = vector.broadcast %32 : vector<1x1x6x6xf32> to vector<2x6x6x6xf32>
    %34 = arith.addf %31, %33 : vector<2x6x6x6xf32>
    %c0_13 = arith.constant 0 : index
    %c0_14 = arith.constant 0 : index
    %c0_15 = arith.constant 0 : index
    %c0_16 = arith.constant 0 : index
    %35 = vector.load %arg5[%c0_13, %c0_14, %c0_15, %c0_16] : memref<2x6x6x6xf32, #tpu.memory_space<vmem>>, vector<2x6x6x6xf32>
    tpu.vector_store %arg5[%c0_13, %c0_14, %c0_15, %c0_16], %34 {strides = array<i32>} : memref<2x6x6x6xf32, #tpu.memory_space<vmem>>, vector<2x6x6x6xf32>,
    return
  }
}

</mosaic_0001>

<llo_original>
// kernel: model_forward.1
$region0: #{model_forward.1}
  #allocation0 [shape = 'u32[]', space=smem, size = 0x4, offset = 0x4, fixed_abs, tag = 'smem constant byte address 0x4 - core index']
  #allocation1 [shape = 'u32[144,128]{1,0:T(1,128)}', space=vmem, size = 0x12000, scoped, tag = 'internal scratch']
  %s0 = inlined_call_operand.vmem [shape: f32[2,6,6,2], index: 0, kind: input, shape index: {}]
  %s1 = inlined_call_operand.vmem [shape: f32[2,6,2,6], index: 1, kind: input, shape index: {}]
  %s2 = inlined_call_operand.vmem [shape: f32[2,6], index: 2, kind: input, shape index: {}]
  %s3 = inlined_call_operand.vmem [shape: f32[6,2], index: 3, kind: input, shape index: {}]
  %s4 = inlined_call_operand.vmem [shape: f32[6,6], index: 4, kind: input, shape index: {}]
  %s5 = inlined_call_operand.vmem [shape: f32[2,6,6,6], index: 5, kind: output, shape index: {}]
  %s6 = sld [smem:[#allocation0]]
  $region30: #{model_forward.1} parent=0
    _
  %s8 = ssub.s32 1, %s6
  %s9 = scalar_select 0, %s8, %s6
  // Predicated region
  $region2: #{model_forward.1} parent=0 // pred_check
    _
  $region3: #{model_forward.1} parent=0 // pred_check_branch
    %11 = sbr.rel (0) target = $region5
  $region4: #{model_forward.1} parent=0 // pred_region
    _
  $region5: #{model_forward.1} parent=0 // pred_fallthru
    _
  // Predicated region
  $region6: #{model_forward.1} parent=0 // pred_check
    _
  $region7: #{model_forward.1} parent=0 // pred_check_branch
    %13 = sbr.rel (0) target = $region9
  $region8: #{model_forward.1} parent=0 // pred_region
    _
  $region9: #{model_forward.1} parent=0 // pred_fallthru
    _
  // Predicated region
  $region10: #{model_forward.1} parent=0 // pred_check
    _
  $region11: #{model_forward.1} parent=0 // pred_check_branch
    %15 = sbr.rel (0) target = $region13
  $region12: #{model_forward.1} parent=0 // pred_region
    _
  $region13: #{model_forward.1} parent=0 // pred_fallthru
    _
  // Predicated region
  $region14: #{model_forward.1} parent=0 // pred_check
    _
  $region15: #{model_forward.1} parent=0 // pred_check_branch
    %17 = sbr.rel (0) target = $region17
  $region16: #{model_forward.1} parent=0 // pred_region
    _
  $region17: #{model_forward.1} parent=0 // pred_fallthru
    _
  // Predicated region
  $region18: #{model_forward.1} parent=0 // pred_check
    _
  $region19: #{model_forward.1} parent=0 // pred_check_branch
    %19 = sbr.rel (0) target = $region21
  $region20: #{model_forward.1} parent=0 // pred_region
    _
  $region21: #{model_forward.1} parent=0 // pred_fallthru
    _
  %v20 = vld [vmem:[%s0] sm:$0x3f]
  %v21 = vld [vmem:[%s0 + $0x8] sm:$0x3f]
  %v22 = vld [vmem:[%s0 + $0x10] sm:$0x3f]
  %v23 = vld [vmem:[%s0 + $0x18] sm:$0x3f]
  %v24 = vld [vmem:[%s0 + $0x20] sm:$0x3f]
  %v25 = vld [vmem:[%s0 + $0x28] sm:$0x3f]
  %v26 = vld [vmem:[%s0 + $0x30] sm:$0x3f]
  %v27 = vld [vmem:[%s0 + $0x38] sm:$0x3f]
  %v28 = vld [vmem:[%s0 + $0x40] sm:$0x3f]
  %v29 = vld [vmem:[%s0 + $0x48] sm:$0x3f]
  %v30 = vld [vmem:[%s0 + $0x50] sm:$0x3f]
  %v31 = vld [vmem:[%s0 + $0x58] sm:$0x3f]
  %v32 = vld [vmem:[%s1] sm:$0x3]
  %v33 = vld [vmem:[%s1 + $0x2] sm:$0x3]
  %v34 = vld [vmem:[%s1 + $0x4] sm:$0x3]
  %v35 = vld [vmem:[%s1 + $0x6] sm:$0x3]
  %v36 = vld [vmem:[%s1 + $0x8] sm:$0x3]
  %v37 = vld [vmem:[%s1 + $0xa] sm:$0x3]
  %v38 = vld [vmem:[%s1 + $0xc] sm:$0x3]
  %v39 = vld [vmem:[%s1 + $0xe] sm:$0x3]
  %v40 = vld [vmem:[%s1 + $0x10] sm:$0x3]
  %v41 = vld [vmem:[%s1 + $0x12] sm:$0x3]
  %v42 = vld [vmem:[%s1 + $0x14] sm:$0x3]
  %v43 = vld [vmem:[%s1 + $0x16] sm:$0x3]
  %v44 = vld [vmem:[%s2] sm:$0x3]
  %v45 = vld [vmem:[%s3] sm:$0x3f]
  %v46 = vld [vmem:[%s4] sm:$0x3f]
  %48 = vset.pattern.permute.xlu0 0
  %49 = vperm.xlu0 %48, %v20
  %v50 = vpop.permute.xlu0 %49
  %53 = vset.pattern.permute.xlu0 0
  %54 = vperm.xlu0 %53, %v21
  %v55 = vpop.permute.xlu0 %54
  %58 = vset.pattern.permute.xlu0 0
  %59 = vperm.xlu0 %58, %v22
  %v60 = vpop.permute.xlu0 %59
  %63 = vset.pattern.permute.xlu0 0
  %64 = vperm.xlu0 %63, %v23
  %v65 = vpop.permute.xlu0 %64
  %68 = vset.pattern.permute.xlu0 0
  %69 = vperm.xlu0 %68, %v24
  %v70 = vpop.permute.xlu0 %69
  %73 = vset.pattern.permute.xlu0 0
  %74 = vperm.xlu0 %73, %v25
  %v75 = vpop.permute.xlu0 %74
  %78 = vset.pattern.permute.xlu0 0
  %79 = vperm.xlu0 %78, %v26
  %v80 = vpop.permute.xlu0 %79
  %83 = vset.pattern.permute.xlu0 0
  %84 = vperm.xlu0 %83, %v27
  %v85 = vpop.permute.xlu0 %84
  %88 = vset.pattern.permute.xlu0 0
  %89 = vperm.xlu0 %88, %v28
  %v90 = vpop.permute.xlu0 %89
  %93 = vset.pattern.permute.xlu0 0
  %94 = vperm.xlu0 %93, %v29
  %v95 = vpop.permute.xlu0 %94
  %98 = vset.pattern.permute.xlu0 0
  %99 = vperm.xlu0 %98, %v30
  %v100 = vpop.permute.xlu0 %99
  %103 = vset.pattern.permute.xlu0 0
  %104 = vperm.xlu0 %103, %v31
  %v105 = vpop.permute.xlu0 %104
  %v107 = vlaneseq
  %v108 = vshrl.u32 %v107, 7
  %v109 = vsub.s32 0, %v108
  %v110 = vrot.slane %v44, %v109
  %v111 = vmul.f32 %v50, %v110
  %v112 = vmul.f32 %v55, %v110
  %v113 = vmul.f32 %v60, %v110
  %v114 = vmul.f32 %v65, %v110
  %v115 = vmul.f32 %v70, %v110
  %v116 = vmul.f32 %v75, %v110
  %v117 = vmul.f32 %v80, %v110
  %v118 = vmul.f32 %v85, %v110
  %v119 = vmul.f32 %v90, %v110
  %v120 = vmul.f32 %v95, %v110
  %v121 = vmul.f32 %v100, %v110
  %v122 = vmul.f32 %v105, %v110
  %123 = vset.pattern.permute.xlu0 1
  %124 = vperm.xlu0 %123, %v20
  %v125 = vpop.permute.xlu0 %124
  %127 = vset.pattern.permute.xlu0 1
  %128 = vperm.xlu0 %127, %v21
  %v129 = vpop.permute.xlu0 %128
  %131 = vset.pattern.permute.xlu0 1
  %132 = vperm.xlu0 %131, %v22
  %v133 = vpop.permute.xlu0 %132
  %135 = vset.pattern.permute.xlu0 1
  %136 = vperm.xlu0 %135, %v23
  %v137 = vpop.permute.xlu0 %136
  %139 = vset.pattern.permute.xlu0 1
  %140 = vperm.xlu0 %139, %v24
  %v141 = vpop.permute.xlu0 %140
  %143 = vset.pattern.permute.xlu0 1
  %144 = vperm.xlu0 %143, %v25
  %v145 = vpop.permute.xlu0 %144
  %147 = vset.pattern.permute.xlu0 1
  %148 = vperm.xlu0 %147, %v26
  %v149 = vpop.permute.xlu0 %148
  %151 = vset.pattern.permute.xlu0 1
  %152 = vperm.xlu0 %151, %v27
  %v153 = vpop.permute.xlu0 %152
  %155 = vset.pattern.permute.xlu0 1
  %156 = vperm.xlu0 %155, %v28
  %v157 = vpop.permute.xlu0 %156
  %159 = vset.pattern.permute.xlu0 1
  %160 = vperm.xlu0 %159, %v29
  %v161 = vpop.permute.xlu0 %160
  %163 = vset.pattern.permute.xlu0 1
  %164 = vperm.xlu0 %163, %v30
  %v165 = vpop.permute.xlu0 %164
  %167 = vset.pattern.permute.xlu0 1
  %168 = vperm.xlu0 %167, %v31
  %v169 = vpop.permute.xlu0 %168
  %v171 = vlaneseq
  %v172 = vshrl.u32 %v171, 7
  %v173 = vsub.s32 1, %v172
  %v174 = vrot.slane %v44, %v173
  %v175 = vmul.f32 %v125, %v174
  %v176 = vmul.f32 %v129, %v174
  %v177 = vmul.f32 %v133, %v174
  %v178 = vmul.f32 %v137, %v174
  %v179 = vmul.f32 %v141, %v174
  %v180 = vmul.f32 %v145, %v174
  %v181 = vmul.f32 %v149, %v174
  %v182 = vmul.f32 %v153, %v174
  %v183 = vmul.f32 %v157, %v174
  %v184 = vmul.f32 %v161, %v174
  %v185 = vmul.f32 %v165, %v174
  %v186 = vmul.f32 %v169, %v174
  %v187 = vadd.f32 %v111, %v175
  %v188 = vadd.f32 %v112, %v176
  %v189 = vadd.f32 %v113, %v177
  %v190 = vadd.f32 %v114, %v178
  %v191 = vadd.f32 %v115, %v179
  %v192 = vadd.f32 %v116, %v180
  %v193 = vadd.f32 %v117, %v181
  %v194 = vadd.f32 %v118, %v182
  %v195 = vadd.f32 %v119, %v183
  %v196 = vadd.f32 %v120, %v184
  %v197 = vadd.f32 %v121, %v185
  %v198 = vadd.f32 %v122, %v186
  %v199 = vlaneseq
  %v200 = vshrl.u32 %v199, 7
  %v201 = vsub.s32 0, %v200
  %v202 = vrot.slane %v32, %v201
  %v203 = vlaneseq
  %v204 = vshrl.u32 %v203, 7
  %v205 = vsub.s32 0, %v204
  %v206 = vrot.slane %v33, %v205
  %v207 = vlaneseq
  %v208 = vshrl.u32 %v207, 7
  %v209 = vsub.s32 0, %v208
  %v210 = vrot.slane %v34, %v209
  %v211 = vlaneseq
  %v212 = vshrl.u32 %v211, 7
  %v213 = vsub.s32 0, %v212
  %v214 = vrot.slane %v35, %v213
  %v215 = vlaneseq
  %v216 = vshrl.u32 %v215, 7
  %v217 = vsub.s32 0, %v216
  %v218 = vrot.slane %v36, %v217
  %v219 = vlaneseq
  %v220 = vshrl.u32 %v219, 7
  %v221 = vsub.s32 0, %v220
  %v222 = vrot.slane %v37, %v221
  %v223 = vlaneseq
  %v224 = vshrl.u32 %v223, 7
  %v225 = vsub.s32 0, %v224
  %v226 = vrot.slane %v38, %v225
  %v227 = vlaneseq
  %v228 = vshrl.u32 %v227, 7
  %v229 = vsub.s32 0, %v228
  %v230 = vrot.slane %v39, %v229
  %v231 = vlaneseq
  %v232 = vshrl.u32 %v231, 7
  %v233 = vsub.s32 0, %v232
  %v234 = vrot.slane %v40, %v233
  %v235 = vlaneseq
  %v236 = vshrl.u32 %v235, 7
  %v237 = vsub.s32 0, %v236
  %v238 = vrot.slane %v41, %v237
  %v239 = vlaneseq
  %v240 = vshrl.u32 %v239, 7
  %v241 = vsub.s32 0, %v240
  %v242 = vrot.slane %v42, %v241
  %v243 = vlaneseq
  %v244 = vshrl.u32 %v243, 7
  %v245 = vsub.s32 0, %v244
  %v246 = vrot.slane %v43, %v245
  %248 = vset.pattern.permute.xlu0 0
  %249 = vperm.xlu0 %248, %v45
  %v250 = vpop.permute.xlu0 %249
  %v252 = vmul.f32 %v202, %v250
  %v253 = vmul.f32 %v206, %v250
  %v254 = vmul.f32 %v210, %v250
  %v255 = vmul.f32 %v214, %v250
  %v256 = vmul.f32 %v218, %v250
  %v257 = vmul.f32 %v222, %v250
  %v258 = vmul.f32 %v226, %v250
  %v259 = vmul.f32 %v230, %v250
  %v260 = vmul.f32 %v234, %v250
  %v261 = vmul.f32 %v238, %v250
  %v262 = vmul.f32 %v242, %v250
  %v263 = vmul.f32 %v246, %v250
  %v264 = vlaneseq
  %v265 = vshrl.u32 %v264, 7
  %v266 = vsub.s32 1, %v265
  %v267 = vrot.slane %v32, %v266
  %v268 = vlaneseq
  %v269 = vshrl.u32 %v268, 7
  %v270 = vsub.s32 1, %v269
  %v271 = vrot.slane %v33, %v270
  %v272 = vlaneseq
  %v273 = vshrl.u32 %v272, 7
  %v274 = vsub.s32 1, %v273
  %v275 = vrot.slane %v34, %v274
  %v276 = vlaneseq
  %v277 = vshrl.u32 %v276, 7
  %v278 = vsub.s32 1, %v277
  %v279 = vrot.slane %v35, %v278
  %v280 = vlaneseq
  %v281 = vshrl.u32 %v280, 7
  %v282 = vsub.s32 1, %v281
  %v283 = vrot.slane %v36, %v282
  %v284 = vlaneseq
  %v285 = vshrl.u32 %v284, 7
  %v286 = vsub.s32 1, %v285
  %v287 = vrot.slane %v37, %v286
  %v288 = vlaneseq
  %v289 = vshrl.u32 %v288, 7
  %v290 = vsub.s32 1, %v289
  %v291 = vrot.slane %v38, %v290
  %v292 = vlaneseq
  %v293 = vshrl.u32 %v292, 7
  %v294 = vsub.s32 1, %v293
  %v295 = vrot.slane %v39, %v294
  %v296 = vlaneseq
  %v297 = vshrl.u32 %v296, 7
  %v298 = vsub.s32 1, %v297
  %v299 = vrot.slane %v40, %v298
  %v300 = vlaneseq
  %v301 = vshrl.u32 %v300, 7
  %v302 = vsub.s32 1, %v301
  %v303 = vrot.slane %v41, %v302
  %v304 = vlaneseq
  %v305 = vshrl.u32 %v304, 7
  %v306 = vsub.s32 1, %v305
  %v307 = vrot.slane %v42, %v306
  %v308 = vlaneseq
  %v309 = vshrl.u32 %v308, 7
  %v310 = vsub.s32 1, %v309
  %v311 = vrot.slane %v43, %v310
  %312 = vset.pattern.permute.xlu0 1
  %313 = vperm.xlu0 %312, %v45
  %v314 = vpop.permute.xlu0 %313
  %v316 = vmul.f32 %v267, %v314
  %v317 = vmul.f32 %v271, %v314
  %v318 = vmul.f32 %v275, %v314
  %v319 = vmul.f32 %v279, %v314
  %v320 = vmul.f32 %v283, %v314
  %v321 = vmul.f32 %v287, %v314
  %v322 = vmul.f32 %v291, %v314
  %v323 = vmul.f32 %v295, %v314
  %v324 = vmul.f32 %v299, %v314
  %v325 = vmul.f32 %v303, %v314
  %v326 = vmul.f32 %v307, %v314
  %v327 = vmul.f32 %v311, %v314
  %v328 = vadd.f32 %v252, %v316
  %v329 = vadd.f32 %v253, %v317
  %v330 = vadd.f32 %v254, %v318
  %v331 = vadd.f32 %v255, %v319
  %v332 = vadd.f32 %v256, %v320
  %v333 = vadd.f32 %v257, %v321
  %v334 = vadd.f32 %v258, %v322
  %v335 = vadd.f32 %v259, %v323
  %v336 = vadd.f32 %v260, %v324
  %v337 = vadd.f32 %v261, %v325
  %v338 = vadd.f32 %v262, %v326
  %v339 = vadd.f32 %v263, %v327
  %v340 = vadd.f32 %v187, %v328
  %v341 = vadd.f32 %v188, %v329
  %v342 = vadd.f32 %v189, %v330
  %v343 = vadd.f32 %v190, %v331
  %v344 = vadd.f32 %v191, %v332
  %v345 = vadd.f32 %v192, %v333
  %v346 = vadd.f32 %v193, %v334
  %v347 = vadd.f32 %v194, %v335
  %v348 = vadd.f32 %v195, %v336
  %v349 = vadd.f32 %v196, %v337
  %v350 = vadd.f32 %v197, %v338
  %v351 = vadd.f32 %v198, %v339
  %v352 = vadd.f32 %v340, %v46
  %v353 = vadd.f32 %v341, %v46
  %v354 = vadd.f32 %v342, %v46
  %v355 = vadd.f32 %v343, %v46
  %v356 = vadd.f32 %v344, %v46
  %v357 = vadd.f32 %v345, %v46
  %v358 = vadd.f32 %v346, %v46
  %v359 = vadd.f32 %v347, %v46
  %v360 = vadd.f32 %v348, %v46
  %v361 = vadd.f32 %v349, %v46
  %v362 = vadd.f32 %v350, %v46
  %v363 = vadd.f32 %v351, %v46
  %vm364 = vcmask 46080
  %365 = vst.msk [vmem:[%s5] sm:$0x3f] %vm364, %v352
  %366 = vst.msk [vmem:[%s5 + $0x8] sm:$0x3f] %vm364, %v353
  %367 = vst.msk [vmem:[%s5 + $0x10] sm:$0x3f] %vm364, %v354
  %368 = vst.msk [vmem:[%s5 + $0x18] sm:$0x3f] %vm364, %v355
  %369 = vst.msk [vmem:[%s5 + $0x20] sm:$0x3f] %vm364, %v356
  %370 = vst.msk [vmem:[%s5 + $0x28] sm:$0x3f] %vm364, %v357
  %371 = vst.msk [vmem:[%s5 + $0x30] sm:$0x3f] %vm364, %v358
  %372 = vst.msk [vmem:[%s5 + $0x38] sm:$0x3f] %vm364, %v359
  %373 = vst.msk [vmem:[%s5 + $0x40] sm:$0x3f] %vm364, %v360
  %374 = vst.msk [vmem:[%s5 + $0x48] sm:$0x3f] %vm364, %v361
  %375 = vst.msk [vmem:[%s5 + $0x50] sm:$0x3f] %vm364, %v362
  %376 = vst.msk [vmem:[%s5 + $0x58] sm:$0x3f] %vm364, %v363
  // Predicated region
  $region22: #{model_forward.1} parent=0 // pred_check
    _
  $region23: #{model_forward.1} parent=0 // pred_check_branch
    %378 = sbr.rel (0) target = $region25
  $region24: #{model_forward.1} parent=0 // pred_region
    _
  $region25: #{model_forward.1} parent=0 // pred_fallthru
    _
  // Predicated region
  $region26: #{model_forward.1} parent=0 // pred_check
    _
  $region27: #{model_forward.1} parent=0 // pred_check_branch
    %380 = sbr.rel (0) target = $region29
  $region28: #{model_forward.1} parent=0 // pred_region
    _
  $region29: #{model_forward.1} parent=0 // pred_fallthru
    _

</llo_original>
